<compile_context>
chip_gen: v5e
topology: v5e:2x2
jax: 0.10.0
libtpu: 0.0.40
codegen_flags: <defaults>
</compile_context>

<pallas_src>
import functools

import jax
import jax.numpy as jnp
from jax.experimental import pallas as pl
from jax.experimental.pallas import tpu as pltpu


LANE = 128


def _relu3_kernel(x_ref, o_ref):
    # min(max(x, 0), 3) — 2 VPU ops, stays in the input dtype.
    o_ref[...] = jnp.minimum(jnp.maximum(x_ref[...], 0), 3)


@functools.lru_cache(maxsize=1)
def _pick_block_bytes() -> int:
    """Per-generation block-size sweet spot (bytes per input block)."""
    kind = ""
    try:
        kind = jax.devices()[0].device_kind.lower()
    except Exception:  # pragma: no cover - no device / unusual backend
        pass
    if "v5" in kind:            # ~820 GB/s HBM, 16 MiB default scoped VMEM
        return 2 << 20
    if "v6" in kind:            # ~1.4 TB/s HBM
        return 4 << 20
    if "v7" in kind or "7x" in kind:  # ~3.2 TB/s HBM, 64 MiB VMEM per TC
        return 8 << 20
    return 4 << 20              # unknown / future chips: middle of the road


def _relu3_flat_aligned(flat: jax.Array, block_bytes: int) -> jax.Array:
    """Run the kernel on a flat array whose length is a multiple of 128."""
    n = flat.shape[0]
    dtype = flat.dtype
    itemsize = jnp.dtype(dtype).itemsize
    # native sublane packing: 8 rows for 32-bit, 16 for bf16, 32 for 8-bit
    sub = max(8, 32 // itemsize)

    # Widest lane-dense last dim (multiple of 128) that divides n exactly.
    width = LANE
    for w in (1024, 512, 256, LANE):
        if n % w == 0:
            width = w
            break
    rows = n // width
    x2d = flat.reshape(rows, width)

    row_bytes = width * itemsize
    target_rows = max(sub, block_bytes // row_bytes)

    if rows <= target_rows:
        # Fits in a single block: take the full extent (no alignment
        # requirement when the block equals the array dims).
        tr = rows
    else:
        # Larger than one target block: split, but keep >= ~4 grid steps so
        # DMA-in, compute and DMA-out overlap instead of being exposed.
        tr = min(target_rows, pl.cdiv(rows, 4))
        tr = max(sub, (tr // sub) * sub)

    grid = (pl.cdiv(rows, tr),)  # ragged last block handled by Pallas masking

    block_actual = tr * width * itemsize
    # in + out, each double-buffered, plus headroom; never below the 32 MiB
    # default so we only ever *raise* the compiler's scoped-VMEM budget.
    vmem_limit = max(32 << 20, 4 * block_actual + (2 << 20))

    out2d = pl.pallas_call(
        _relu3_kernel,
        out_shape=jax.ShapeDtypeStruct((rows, width), dtype),
        grid_spec=pltpu.PrefetchScalarGridSpec(
            num_scalar_prefetch=0,
            grid=grid,
            in_specs=[pl.BlockSpec((tr, width), lambda i: (i, 0))],
            out_specs=pl.BlockSpec((tr, width), lambda i: (i, 0)),
        ),
        compiler_params=pltpu.CompilerParams(
            dimension_semantics=("parallel",),
            vmem_limit_bytes=int(vmem_limit),
        ),
        cost_estimate=pl.CostEstimate(
            flops=2 * n, transcendentals=0, bytes_accessed=2 * n * itemsize
        ),
    )(x2d)

    return out2d.reshape(-1)


def relu3(x: jax.Array, *, min_pallas_bytes: int = 1 << 20) -> jax.Array:
    """ReLU3: clamp(x, 0, 3) elementwise. Any shape; float or int dtype."""
    orig_shape = x.shape
    n = int(x.size)
    if n == 0:
        return x
    itemsize = jnp.dtype(x.dtype).itemsize

    # Tiny tensors: a fused XLA clamp beats kernel launch + reshape plumbing.
    if n * itemsize < min_pallas_bytes:
        return jnp.clip(x, 0, 3)

    flat = x.reshape(-1)
    block_bytes = _pick_block_bytes()

    n_main = (n // LANE) * LANE
    if n_main == n:
        out = _relu3_flat_aligned(flat, block_bytes)
    elif n_main == 0:
        out = jnp.clip(flat, 0, 3)
    else:
        # Unaligned count: kernel on the 128-aligned prefix, jnp.clip on the
        # <=127-element tail. Avoids full-array pad + slice copies.
        main = _relu3_flat_aligned(flat[:n_main], block_bytes)
        tail = jnp.clip(flat[n_main:], 0, 3)
        out = jnp.concatenate([main, tail])

    return out.reshape(orig_shape)


def _relu3_ref(x):
    return jnp.clip(x, 0, 3)


if __name__ == "__main__":
    key = jax.random.PRNGKey(0)
    # NCHW, matching the PyTorch module's typical input.
    x = jax.random.normal(key, (2, 4, 16, 16), dtype=jnp.float32) * 3.0

    # Force the Pallas kernel path even at this small test size.
    y = relu3(x, min_pallas_bytes=0)
    jax.block_until_ready(y)
    y_ref = _relu3_ref(x)
    assert y.shape == x.shape and y.dtype == x.dtype
    assert jnp.max(jnp.abs(y - y_ref)) == 0.0, "mismatch vs reference (kernel path)"

    # Default path (small-input fast path) must agree too.
    y_fast = relu3(x)
    jax.block_until_ready(y_fast)
    assert jnp.max(jnp.abs(y_fast - y_ref)) == 0.0, "mismatch vs reference (fast path)"

    # bf16, 128-divisible but not 256-divisible element count (width=128 branch).
    x2 = jax.random.normal(jax.random.PRNGKey(1), (3, 5, 8, 16), dtype=jnp.bfloat16) * 4.0
    y2 = relu3(x2, min_pallas_bytes=0)
    jax.block_until_ready(y2)
    assert y2.dtype == x2.dtype
    assert jnp.max(jnp.abs(y2.astype(jnp.float32)
                           - _relu3_ref(x2).astype(jnp.float32))) == 0.0

    # Unaligned element count: kernel prefix + jnp.clip tail (no pad copies).
    x3 = jax.random.normal(jax.random.PRNGKey(2), (3, 67), dtype=jnp.float32) * 5.0
    y3 = relu3(x3, min_pallas_bytes=0)
    jax.block_until_ready(y3)
    assert jnp.max(jnp.abs(y3 - _relu3_ref(x3))) == 0.0, "mismatch on unaligned size"

    print("KERNEL_OK")
</pallas_src>

<mosaic_0001>
module attributes {stable_mosaic.version = 11 : i64} {
  func.func @_relu3_kernel(%arg0: i32, %arg1: memref<2x1024xf32, #tpu.memory_space<vmem>>, %arg2: memref<2x1024xf32, #tpu.memory_space<vmem>>) attributes {dimension_semantics = [#tpu.dimension_semantics<parallel>], iteration_bounds = array<i64: 1>, scalar_prefetch = 0 : i64, scratch_operands = 0 : i64, tpu.core_type = #tpu.core_type<tc>, window_params = [{transform_indices = @transform_0, window_bounds = array<i64: 2, 1024>}, {transform_indices = @transform_1, window_bounds = array<i64: 2, 1024>}]} {
    %c0 = arith.constant 0 : index
    %c0_0 = arith.constant 0 : index
    %0 = vector.load %arg1[%c0, %c0_0] : memref<2x1024xf32, #tpu.memory_space<vmem>>, vector<2x1024xf32>
    %cst = arith.constant 0.000000e+00 : f32
    %1 = vector.broadcast %cst : f32 to vector<2x1024xf32>
    %2 = arith.maximumf %0, %1 : vector<2x1024xf32>
    %cst_1 = arith.constant 3.000000e+00 : f32
    %3 = vector.broadcast %cst_1 : f32 to vector<2x1024xf32>
    %4 = arith.minimumf %2, %3 : vector<2x1024xf32>
    %c0_2 = arith.constant 0 : index
    %c0_3 = arith.constant 0 : index
    %5 = vector.load %arg2[%c0_2, %c0_3] : memref<2x1024xf32, #tpu.memory_space<vmem>>, vector<2x1024xf32>
    tpu.vector_store %arg2[%c0_2, %c0_3], %4 {strides = array<i32>} : memref<2x1024xf32, #tpu.memory_space<vmem>>, vector<2x1024xf32>,
    return
  }
  func.func @transform_0(%arg0: i32) -> (i32, i32) {
    %c0_i32 = arith.constant 0 : i32
    %c0_i32_0 = arith.constant 0 : i32
    return %arg0, %c0_i32 : i32, i32
  }
  func.func @transform_1(%arg0: i32) -> (i32, i32) {
    %c0_i32 = arith.constant 0 : i32
    %c0_i32_0 = arith.constant 0 : i32
    return %arg0, %c0_i32 : i32, i32
  }
}

</mosaic_0001>

<llo_original>
// kernel: tpu_custom_call.1
$region0: #{tpu_custom_call.1}
  #allocation0 [shape = 'u32[]', space=smem, size = 0x4, offset = 0x4, fixed_abs, tag = 'smem constant byte address 0x4 - core index']
  #allocation1 [shape = 'u32[72,128]{1,0:T(1,128)}', space=vmem, size = 0x9000, scoped, tag = 'internal scratch']
  %s0 = inlined_call_operand.hbm [shape: f32[2,1024], index: 0, kind: input, shape index: {}]
  %s1 = inlined_call_operand.hbm [shape: f32[2,1024], index: 1, kind: output, shape index: {}]
  %s2 = sld [smem:[#allocation0]]
  $region18: #{tpu_custom_call.1} parent=0
    _
  %s4 = ssub.s32 1, %s2
  %s5 = scalar_select 0, %s4, %s2
  $region1: #{tpu_custom_call.1} parent=0
    #allocation2 [shape = 'u8[8192]{0}', space=vmem, size = 0x2000, scoped, tag = 'input window, operand 0, single buffered']
    #allocation3 [shape = 's32[1]{0}', space=sflag, size = 0x4, scoped, tag = 'scoped memory for tpu_custom_call.1']
    #allocation4 [shape = 's32[1]{0}', space=sflag, size = 0x4, scoped, tag = 'scoped memory for tpu_custom_call.1']
    #allocation5 [shape = 'u8[8192]{0}', space=vmem, size = 0x2000, scoped, tag = 'output window, operand 0, single buffered']
    %6 = vsyncpa [#allocation3], 0
    %7 = vsyncpa [#allocation4], 0
    // Predicated region
    $region2: #{tpu_custom_call.1} parent=1 // pred_check
      _
    $region3: #{tpu_custom_call.1} parent=1 // pred_check_branch
      %9 = sbr.rel (0) target = $region5
    $region4: #{tpu_custom_call.1} parent=1 // pred_region
      %11 = vsyncadd [#allocation3], 0
      %s13 = sshll.u32 %s0, 4
      %s14 = int_to_ptr.hbm [resolvable:$true] %s13
      %s15 = sshll.u32 [#allocation2], 4
      %s16 = int_to_ptr.vmem [resolvable:$true] %s15
      %18 = dma.hbm_to_vmem [thread:$0]  %s14, 256, %s16, [#allocation3]
    $region5: #{tpu_custom_call.1} parent=1 // pred_fallthru
      _
    // Predicated region
    $region6: #{tpu_custom_call.1} parent=1 // pred_check
      _
    $region7: #{tpu_custom_call.1} parent=1 // pred_check_branch
      %20 = sbr.rel (0) target = $region9
    $region8: #{tpu_custom_call.1} parent=1 // pred_region
      %22 = dma.done [#allocation3], 256
    $region9: #{tpu_custom_call.1} parent=1 // pred_fallthru
      _
    %v23 = vld [vmem:[#allocation2] sm:$0xff]
    %v24 = vld [vmem:[#allocation2 + $0x8] sm:$0xff]
    %v25 = vmax.f32 %v23, 0.0
    %v26 = vmax.f32 %v24, 0.0
    %v27 = vmin.f32 %v25, 3.0
    %v28 = vmin.f32 %v26, 3.0
    %29 = vst [vmem:[#allocation5] sm:$0xff] %v27
    %30 = vst [vmem:[#allocation5 + $0x8] sm:$0xff] %v28
    // Predicated region
    $region10: #{tpu_custom_call.1} parent=1 // pred_check
      _
    $region11: #{tpu_custom_call.1} parent=1 // pred_check_branch
      %32 = sbr.rel (0) target = $region13
    $region12: #{tpu_custom_call.1} parent=1 // pred_region
      %34 = vsyncadd [#allocation4], 0
      %s36 = sshll.u32 [#allocation5], 4
      %s37 = int_to_ptr.vmem [resolvable:$true] %s36
      %s38 = sshll.u32 %s1, 4
      %s39 = int_to_ptr.hbm [resolvable:$true] %s38
      %41 = dma.vmem_to_hbm [thread:$0]  %s37, 256, %s39, [#allocation4]
    $region13: #{tpu_custom_call.1} parent=1 // pred_fallthru
      _
    // Predicated region
    $region14: #{tpu_custom_call.1} parent=1 // pred_check
      _
    $region15: #{tpu_custom_call.1} parent=1 // pred_check_branch
      %43 = sbr.rel (0) target = $region17
    $region16: #{tpu_custom_call.1} parent=1 // pred_region
      %45 = dma.done [#allocation4], 256
    $region17: #{tpu_custom_call.1} parent=1 // pred_fallthru
      _
    %46 = vsyncpa [#allocation3], 1
    %47 = vsyncpa [#allocation4], 1

</llo_original>
